<compile_context>
chip_gen: v7x
topology: tpu7x:2x2x1
jax: 0.10.0
libtpu: 0.0.40
codegen_flags: <defaults>
</compile_context>

<pallas_src>
import numpy as np
import jax
import jax.numpy as jnp
from jax.experimental import pallas as pl
from jax.experimental.pallas import tpu as pltpu

WIRES = 6                 # module's self.wires (embedding / probs wires)
N_QUBITS = WIRES + 1      # circuit touches wires 0..6
DIM = 2 ** WIRES          # 64 output channels

# ---------------------------------------------------------------------------
# Parameter setup (plain numpy): build the fixed circuit matrix once.
# ---------------------------------------------------------------------------
_I2 = np.eye(2, dtype=np.complex128)
_P0 = np.array([[1, 0], [0, 0]], dtype=np.complex128)
_P1 = np.array([[0, 0], [0, 1]], dtype=np.complex128)
_X2 = np.array([[0, 1], [1, 0]], dtype=np.complex128)


def _rot(phi, theta, omega):
    """qml.Rot(phi, theta, omega) = RZ(omega) RY(theta) RZ(phi)  (unitary ZYZ)."""
    c, s = np.cos(theta / 2.0), np.sin(theta / 2.0)
    return np.array(
        [[np.exp(-0.5j * (phi + omega)) * c, -np.exp(0.5j * (phi - omega)) * s],
         [np.exp(-0.5j * (phi - omega)) * s, np.exp(0.5j * (phi + omega)) * c]],
        dtype=np.complex128)


def _kron_all(mats):
    out = mats[0]
    for m in mats[1:]:
        out = np.kron(out, m)
    return out


def _single(wire, gate):
    mats = [_I2] * N_QUBITS
    mats[wire] = gate
    return _kron_all(mats)


def _cnot(ctrl, tgt):
    m0 = [_I2] * N_QUBITS
    m0[ctrl] = _P0
    m1 = [_I2] * N_QUBITS
    m1[ctrl] = _P1
    m1[tgt] = _X2
    return _kron_all(m0) + _kron_all(m1)


def circuit_matrix(rot_weights):
    """(7,3) Rot angles -> M (128, 64) complex: psi = M @ v, v in torch-unfold (c,kh,kw) order."""
    rot_weights = np.asarray(rot_weights, dtype=np.float64)
    U = np.eye(2 ** N_QUBITS, dtype=np.complex128)
    for w in range(N_QUBITS):                       # Rot on wires 0..6
        U = _single(w, _rot(*rot_weights[w])) @ U
    for c in range(N_QUBITS):                       # CNOT (0,1)...(5,6),(6,0)
        U = _cnot(c, (c + 1) % N_QUBITS) @ U
    return U[:, 0::2]                               # wire 6 (LSB) starts in |0>


def build_qconv_weights(rot_weights, in_channels, k_height, k_width):
    """Returns (w_big (128,512) f32, sel (128,128) f32, M (128,64) complex128)."""
    M = circuit_matrix(rot_weights)
    C, kH, kW = in_channels, k_height, k_width
    K = C * kH * kW
    assert K <= DIM, "patch does not fit into 2**wires amplitudes"

    # Kernel-side patches are assembled in (kh, kw, c) order (cheap NHWC slicing);
    # permute circuit-matrix columns so this matches the unfold (c, kh, kw) embedding.
    perm = np.arange(DIM)
    for c in range(C):
        for kh in range(kH):
            for kw in range(kW):
                i_orig = c * (kH * kW) + kh * kW + kw
                i_new = (kh * kW + kw) * C + c
                perm[i_new] = i_orig
    Mp = M[:, perm]
    Ae = np.real(Mp[0::2, :]).T      # (64,64): Re psi[2j]
    Ao = np.real(Mp[1::2, :]).T      #          Re psi[2j+1]
    Be = np.imag(Mp[0::2, :]).T      #          Im psi[2j]
    Bo = np.imag(Mp[1::2, :]).T      #          Im psi[2j+1]

    # Two patches packed per 128-lane row; column groups ordered so the lane-aligned
    # folds  y2[:, :256]+y2[:, 256:]  then  s[:, :128]+s[:, 128:]  yield [p_a | p_b]:
    #   columns = [Ae_a Ae_b | Be_a Be_b | Ao_a Ao_b | Bo_a Bo_b]   (64 each)
    w_big = np.zeros((2 * DIM, 8 * DIM), dtype=np.float32)
    for g, comp in enumerate([Ae, Be, Ao, Bo]):
        w_big[0:DIM, (2 * g) * DIM:(2 * g + 1) * DIM] = comp            # patch a rows
        w_big[DIM:2 * DIM, (2 * g + 1) * DIM:(2 * g + 2) * DIM] = comp  # patch b rows

    # 0/1 block matrix: (x*x) @ sel broadcasts each packed patch's squared norm
    # across its own 64 output lanes (AmplitudeEmbedding normalize=True).
    sel = np.zeros((2 * DIM, 2 * DIM), dtype=np.float32)
    sel[:DIM, :DIM] = 1.0
    sel[DIM:, DIM:] = 1.0
    return jnp.asarray(w_big), jnp.asarray(sel), M


# ---------------------------------------------------------------------------
# Pallas kernel: (T, 128) packed raw patches -> (T, 128) packed probabilities.
# ---------------------------------------------------------------------------
def _qconv_packed_kernel(x_ref, w_ref, sel_ref, o_ref):
    x = x_ref[...]                                                        # (T, 128)
    # per-patch squared norm, broadcast to that patch's 64 lanes (MXU)
    den = jnp.dot(x * x, sel_ref[...], preferred_element_type=jnp.float32)  # (T, 128)
    y = jnp.dot(x, w_ref[...], preferred_element_type=jnp.float32)          # (T, 512)
    y2 = y * y
    s = y2[:, :4 * DIM] + y2[:, 4 * DIM:]                                 # (T, 256)
    p = s[:, :2 * DIM] + s[:, 2 * DIM:]                                   # (T, 128) = [p_a|p_b]
    # normalize=True: probs are quadratic in the patch -> divide by ||patch||^2.
    # all-zero (padded) patches produce an all-zero row, same as before.
    o_ref[...] = (p / jnp.maximum(den, 1e-30)).astype(o_ref.dtype)


def _round_up(x, m):
    return ((x + m - 1) // m) * m


def qconv2d_forward(x, w_big, sel, *, kernel_size=3, stride=1, padding='same',
                    tile_rows=512):
    """x: (B, C, H, W) NCHW float32  ->  (B, 64, Ho, Wo) probabilities."""
    B, C, H, W = x.shape
    if isinstance(kernel_size, (tuple, list)):
        kH, kW = kernel_size
    else:
        kH = kW = kernel_size
    if isinstance(stride, (tuple, list)):
        sH, sW = stride
    else:
        sH = sW = stride
    if padding == 'same':
        ph, pw = kH - 1, kW - 1
        p_top, p_bottom = ph // 2 + (ph % 2), ph // 2
        p_left, p_right = pw // 2 + (pw % 2), pw // 2
    elif padding == 'valid':
        p_top = p_bottom = p_left = p_right = 0
    else:
        p_left, p_right, p_top, p_bottom = padding

    # NHWC + spatial zero padding (~input volume of traffic).
    xt = jnp.transpose(x, (0, 2, 3, 1)).astype(jnp.float32)
    if padding != 'valid':
        xt = jnp.pad(xt, ((0, 0), (p_top, p_bottom), (p_left, p_right), (0, 0)))
    Ho = (H + p_top + p_bottom - kH) // sH + 1
    Wo = (W + p_left + p_right - kW) // sW + 1

    # im2col directly in (kh, kw, c) order with the amplitude zero-padding fused,
    # so only one patch slab is materialized before the kernel.
    K = C * kH * kW
    blocks = [xt[:, kh:kh + sH * Ho:sH, kw:kw + sW * Wo:sW, :]
              for kh in range(kH) for kw in range(kW)]
    if K < DIM:
        blocks.append(jnp.zeros((B, Ho, Wo, DIM - K), dtype=jnp.float32))
    patches = jnp.concatenate(blocks, axis=-1)                  # (B, Ho, Wo, 64)

    # Pack two patches per 128-lane row (lane-dense loads / unmasked stores).
    N = B * Ho * Wo
    n_rows = -(-N // 2)
    tr = max(8, min(tile_rows, _round_up(-(-n_rows // 8), 8)))  # keep >= ~8 grid steps
    n_rows_pad = _round_up(n_rows, tr)
    total = 2 * n_rows_pad
    flat = patches.reshape(N, DIM)
    if total != N:
        flat = jnp.pad(flat, ((0, total - N), (0, 0)))
    x_packed = flat.reshape(n_rows_pad, 2 * DIM)

    out_packed = pl.pallas_call(
        _qconv_packed_kernel,
        out_shape=jax.ShapeDtypeStruct((n_rows_pad, 2 * DIM), jnp.float32),
        grid_spec=pltpu.PrefetchScalarGridSpec(
            num_scalar_prefetch=0,
            grid=(n_rows_pad // tr,),
            in_specs=[pl.BlockSpec((tr, 2 * DIM), lambda i: (i, 0)),
                      pl.BlockSpec((2 * DIM, 8 * DIM), lambda i: (0, 0)),   # resident
                      pl.BlockSpec((2 * DIM, 2 * DIM), lambda i: (0, 0))],  # resident
            out_specs=pl.BlockSpec((tr, 2 * DIM), lambda i: (i, 0))),
        compiler_params=pltpu.CompilerParams(
            dimension_semantics=("parallel",),
            vmem_limit_bytes=32 * 1024 * 1024),
    )(x_packed, w_big, sel)

    probs = out_packed.reshape(total, DIM)[:N].reshape(B, Ho * Wo, DIM)
    return jnp.transpose(probs, (0, 2, 1)).reshape(B, DIM, Ho, Wo)


if __name__ == "__main__":
    key = jax.random.PRNGKey(0)
    kx, kw = jax.random.split(key)

    B, C, H, W = 2, 4, 16, 16
    x = jax.random.normal(kx, (B, C, H, W), dtype=jnp.float32)
    # TorchLayer default init: uniform in [0, 2*pi) for each of the 7 Rot triples
    rot_weights = jax.random.uniform(kw, (N_QUBITS, 3), minval=0.0, maxval=2.0 * np.pi)

    w_big, sel, M = build_qconv_weights(np.asarray(rot_weights), C, 3, 3)

    fwd = jax.jit(lambda xx: qconv2d_forward(xx, w_big, sel, kernel_size=3,
                                             stride=1, padding='same'))
    out = jax.block_until_ready(fwd(x))
    assert out.shape == (B, DIM, H, W), out.shape

    # --- independent float64 reference (direct complex state-vector sim) ---
    x_np = np.asarray(x, dtype=np.float64)
    xpad = np.pad(x_np, ((0, 0), (0, 0), (1, 1), (1, 1)))
    ref = np.zeros((B, DIM, H, W), dtype=np.float64)
    for b in range(B):
        for oh in range(H):
            for ow in range(W):
                patch = xpad[b, :, oh:oh + 3, ow:ow + 3].reshape(-1)   # unfold (c,kh,kw)
                v = np.zeros(DIM, dtype=np.float64)
                v[:patch.size] = patch
                v = v / np.linalg.norm(v)
                psi = M @ v
                p = np.abs(psi) ** 2
                ref[b, :, oh, ow] = p[0::2] + p[1::2]

    np.testing.assert_allclose(np.asarray(out, dtype=np.float64), ref,
                               atol=1e-4, rtol=1e-3)
    # probabilities over 6 wires sum to 1 at every output position
    np.testing.assert_allclose(np.asarray(out).sum(axis=1), 1.0, atol=1e-4)

    print("KERNEL_OK")
</pallas_src>

<mosaic_0001>
module attributes {stable_mosaic.version = 11 : i64} {
  func.func @_qconv_packed_kernel(%arg0: i32, %arg1: memref<32x128xf32, #tpu.memory_space<vmem>>, %arg2: memref<128x512xf32, #tpu.memory_space<vmem>>, %arg3: memref<128x128xf32, #tpu.memory_space<vmem>>, %arg4: memref<32x128xf32, #tpu.memory_space<vmem>>) attributes {dimension_semantics = [#tpu.dimension_semantics<parallel>], iteration_bounds = array<i64: 8>, scalar_prefetch = 0 : i64, scratch_operands = 0 : i64, tpu.core_type = #tpu.core_type<tc>, window_params = [{transform_indices = @transform_0, window_bounds = array<i64: 32, 128>}, {pipeline_mode = #tpu.pipeline_mode<synchronous>, transform_indices = @transform_1, window_bounds = array<i64: 128, 512>}, {pipeline_mode = #tpu.pipeline_mode<synchronous>, transform_indices = @transform_2, window_bounds = array<i64: 128, 128>}, {transform_indices = @transform_3, window_bounds = array<i64: 32, 128>}]} {
    %c0 = arith.constant 0 : index
    %c0_0 = arith.constant 0 : index
    %0 = vector.load %arg1[%c0, %c0_0] : memref<32x128xf32, #tpu.memory_space<vmem>>, vector<32x128xf32>
    %1 = arith.mulf %0, %0 : vector<32x128xf32>
    %c0_1 = arith.constant 0 : index
    %c0_2 = arith.constant 0 : index
    %2 = vector.load %arg3[%c0_1, %c0_2] : memref<128x128xf32, #tpu.memory_space<vmem>>, vector<128x128xf32>
    %cst = arith.constant dense<0.000000e+00> : vector<32x128xf32>
    %3 = tpu.matmul %1, %2, %cst {dimension_numbers = #tpu.dot_dimension_numbers<[1], [0], [0], [1], [0, 0, 1, 1], [], []>} : vector<32x128xf32>, vector<128x128xf32>, vector<32x128xf32> -> vector<32x128xf32>
    %c0_3 = arith.constant 0 : index
    %c0_4 = arith.constant 0 : index
    %4 = vector.load %arg2[%c0_3, %c0_4] : memref<128x512xf32, #tpu.memory_space<vmem>>, vector<128x512xf32>
    %cst_5 = arith.constant dense<0.000000e+00> : vector<32x512xf32>
    %5 = tpu.matmul %0, %4, %cst_5 {dimension_numbers = #tpu.dot_dimension_numbers<[1], [0], [0], [1], [0, 0, 1, 1], [], []>} : vector<32x128xf32>, vector<128x512xf32>, vector<32x512xf32> -> vector<32x512xf32>
    %6 = arith.mulf %5, %5 : vector<32x512xf32>
    %7 = vector.extract_strided_slice %6 {offsets = [0, 0], sizes = [32, 256], strides = [1, 1]} : vector<32x512xf32> to vector<32x256xf32>
    %8 = vector.extract_strided_slice %6 {offsets = [0, 256], sizes = [32, 256], strides = [1, 1]} : vector<32x512xf32> to vector<32x256xf32>
    %9 = arith.addf %7, %8 : vector<32x256xf32>
    %10 = vector.extract_strided_slice %9 {offsets = [0, 0], sizes = [32, 128], strides = [1, 1]} : vector<32x256xf32> to vector<32x128xf32>
    %11 = vector.extract_strided_slice %9 {offsets = [0, 128], sizes = [32, 128], strides = [1, 1]} : vector<32x256xf32> to vector<32x128xf32>
    %12 = arith.addf %10, %11 : vector<32x128xf32>
    %cst_6 = arith.constant 1.000000e-30 : f32
    %13 = vector.broadcast %cst_6 : f32 to vector<32x128xf32>
    %14 = arith.maximumf %3, %13 : vector<32x128xf32>
    %15 = arith.divf %12, %14 : vector<32x128xf32>
    %c0_7 = arith.constant 0 : index
    %c0_8 = arith.constant 0 : index
    %16 = vector.load %arg4[%c0_7, %c0_8] : memref<32x128xf32, #tpu.memory_space<vmem>>, vector<32x128xf32>
    tpu.vector_store %arg4[%c0_7, %c0_8], %15 {strides = array<i32>} : memref<32x128xf32, #tpu.memory_space<vmem>>, vector<32x128xf32>,
    return
  }
  func.func @transform_0(%arg0: i32) -> (i32, i32) {
    %c0_i32 = arith.constant 0 : i32
    %c0_i32_0 = arith.constant 0 : i32
    return %arg0, %c0_i32 : i32, i32
  }
  func.func @transform_1(%arg0: i32) -> (i32, i32) {
    %c0_i32 = arith.constant 0 : i32
    %c0_i32_0 = arith.constant 0 : i32
    %c0_i32_1 = arith.constant 0 : i32
    return %c0_i32, %c0_i32_0 : i32, i32
  }
  func.func @transform_2(%arg0: i32) -> (i32, i32) {
    %c0_i32 = arith.constant 0 : i32
    %c0_i32_0 = arith.constant 0 : i32
    %c0_i32_1 = arith.constant 0 : i32
    return %c0_i32, %c0_i32_0 : i32, i32
  }
  func.func @transform_3(%arg0: i32) -> (i32, i32) {
    %c0_i32 = arith.constant 0 : i32
    %c0_i32_0 = arith.constant 0 : i32
    return %arg0, %c0_i32 : i32, i32
  }
}

</mosaic_0001>

<llo_original>
// kernel: _lambda_.1
$region0: #{_lambda_.1}
  #allocation0 [shape = 'u32[]', space=smem, size = 0x4, offset = 0x4, fixed_abs, tag = 'smem constant byte address 0x4 - core index']
  #allocation1 [shape = 'u32[144,128]{1,0:T(1,128)}', space=vmem, size = 0x12000, scoped, tag = 'internal scratch']
  %s0 = inlined_call_operand.vmem [shape: f32[256,128], index: 0, kind: input, shape index: {}]
  %s1 = inlined_call_operand.vmem [shape: f32[128,512], index: 1, kind: input, shape index: {}]
  %s2 = inlined_call_operand.vmem [shape: f32[128,128], index: 2, kind: input, shape index: {}]
  %s3 = inlined_call_operand.vmem [shape: f32[256,128], index: 3, kind: output, shape index: {}]
  %s4 = sld [smem:[#allocation0]]
  $region45: #{_lambda_.1} parent=0
    _
  %s6 = ssub.s32 1, %s4
  %s7 = scalar_select 0, %s6, %s4
  loop: start=0, step=1, limit=10
  $region2: #{_lambda_.1} parent=0 // loop_pre_header
    _
  $region3: #{_lambda_.1} parent=0 // loop_header
    %s9 = sphi 0, %s13
    %p10 = scmp.ge.s32.totalorder %s9, 10
    %s19 = sphi 0, %s21
    %s22 = sphi 0, %s19
    %s23 = sphi 0, %s22
    %s39 = sphi 0, %s23
    %s43 = sphi 0, %s43
    %s45 = sphi 0, %s43
    %s46 = sphi 0, %s45
    %s60 = sphi 0, %s46
    %s64 = sphi 0, %s64
    %s66 = sphi 0, %s64
    %s67 = sphi 0, %s66
    %s81 = sphi 0, %s67
    %s87 = sphi 0, %s89
    %s90 = sphi 0, %s87
    %s91 = sphi 0, %s90
    %s107 = sphi 0, %s91
  $region4: #{_lambda_.1} parent=0 // loop_header_branch
    %12 = sbr.rel (%p10) target = $region8
  $region5: #{_lambda_.1} parent=0 // loop_body
    %s14 = ssub.s32 %s9, 1
    %s15 = ssub.s32 %s9, 2
    %s16 = sadd.s32 %s9, 1
    %s17 = ssub.s32 %s9, %s16
    %p18 = scmp.eq.s32.totalorder %s17, 0
    %s20 = sadd.s32 %s19, 1
    %s21 = scalar_select %p18, %s19, %s20
    %p24 = pneg %p18
    %p25 = scmp.eq.s32.totalorder %s9, 7
    %p26 = por %p24, %p25
    %p27 = scmp.ne.s32.totalorder %s19, %s22
    %p28 = scmp.eq.s32.totalorder %s9, 0
    %p29 = por %p27, %p28
    %p30 = scmp.ne.s32.totalorder %s19, %s22
    %p31 = scmp.eq.s32.totalorder %s14, 7
    %p32 = por %p30, %p31
    %p33 = scmp.ne.s32.totalorder %s22, %s23
    %p34 = scmp.eq.s32.totalorder %s14, 0
    %p35 = por %p33, %p34
    %p36 = scmp.ne.s32.totalorder %s22, %s23
    %p37 = scmp.eq.s32.totalorder %s15, 7
    %p38 = por %p36, %p37
    %p40 = scmp.ne.s32.totalorder %s23, %s39
    %p41 = scmp.eq.s32.totalorder %s15, 0
    %p42 = por %p40, %p41
    %s44 = sadd.s32 %s43, 1
    %p47 = scmp.eq.s32.totalorder %s9, 7
    %p48 = scmp.ne.s32.totalorder %s43, %s45
    %p49 = scmp.eq.s32.totalorder %s9, 0
    %p50 = por %p48, %p49
    %p51 = scmp.ne.s32.totalorder %s43, %s45
    %p52 = scmp.eq.s32.totalorder %s14, 7
    %p53 = por %p51, %p52
    %p54 = scmp.ne.s32.totalorder %s45, %s46
    %p55 = scmp.eq.s32.totalorder %s14, 0
    %p56 = por %p54, %p55
    %p57 = scmp.ne.s32.totalorder %s45, %s46
    %p58 = scmp.eq.s32.totalorder %s15, 7
    %p59 = por %p57, %p58
    %p61 = scmp.ne.s32.totalorder %s46, %s60
    %p62 = scmp.eq.s32.totalorder %s15, 0
    %p63 = por %p61, %p62
    %s65 = sadd.s32 %s64, 1
    %p68 = scmp.eq.s32.totalorder %s9, 7
    %p69 = scmp.ne.s32.totalorder %s64, %s66
    %p70 = scmp.eq.s32.totalorder %s9, 0
    %p71 = por %p69, %p70
    %p72 = scmp.ne.s32.totalorder %s64, %s66
    %p73 = scmp.eq.s32.totalorder %s14, 7
    %p74 = por %p72, %p73
    %p75 = scmp.ne.s32.totalorder %s66, %s67
    %p76 = scmp.eq.s32.totalorder %s14, 0
    %p77 = por %p75, %p76
    %p78 = scmp.ne.s32.totalorder %s66, %s67
    %p79 = scmp.eq.s32.totalorder %s15, 7
    %p80 = por %p78, %p79
    %p82 = scmp.ne.s32.totalorder %s67, %s81
    %p83 = scmp.eq.s32.totalorder %s15, 0
    %p84 = por %p82, %p83
    %s85 = ssub.s32 %s9, %s16
    %p86 = scmp.eq.s32.totalorder %s85, 0
    %s88 = sadd.s32 %s87, 1
    %s89 = scalar_select %p86, %s87, %s88
    %p92 = pneg %p86
    %p93 = scmp.eq.s32.totalorder %s9, 7
    %p94 = por %p92, %p93
    %p95 = scmp.ne.s32.totalorder %s87, %s90
    %p96 = scmp.eq.s32.totalorder %s9, 0
    %p97 = por %p95, %p96
    %p98 = scmp.ne.s32.totalorder %s87, %s90
    %p99 = scmp.eq.s32.totalorder %s14, 7
    %p100 = por %p98, %p99
    %p101 = scmp.ne.s32.totalorder %s90, %s91
    %p102 = scmp.eq.s32.totalorder %s14, 0
    %p103 = por %p101, %p102
    %p104 = scmp.ne.s32.totalorder %s90, %s91
    %p105 = scmp.eq.s32.totalorder %s15, 7
    %p106 = por %p104, %p105
    %p108 = scmp.ne.s32.totalorder %s91, %s107
    %p109 = scmp.eq.s32.totalorder %s15, 0
    %p110 = por %p108, %p109
    %p111 = scmp.le.s32.totalorder 1, %s9
    %p112 = scmp.lt.s32.totalorder %s9, 9
    %p113 = pnand %p111, %p112
    %p114 = pneg %p113
    // Predicated region
    $region9: #{_lambda_.1} parent=5 // pred_check
      _
    $region10: #{_lambda_.1} parent=5 // pred_check_branch
      %116 = sbr.rel (%p113) target = $region12
    $region11: #{_lambda_.1} parent=5 // pred_region
      %s117 = ssub.s32 %s9, 1
      // Predicated region
      $region13: #{_lambda_.1} parent=11 // pred_check
        %p118 = pneg %p56
      $region14: #{_lambda_.1} parent=11 // pred_check_branch
        %120 = sbr.rel (%p118) target = $region16
      $region15: #{_lambda_.1} parent=11 // pred_region
        _
      $region16: #{_lambda_.1} parent=11 // pred_fallthru
        _
      // Predicated region
      $region17: #{_lambda_.1} parent=11 // pred_check
        %p121 = pneg %p77
      $region18: #{_lambda_.1} parent=11 // pred_check_branch
        %123 = sbr.rel (%p121) target = $region20
      $region19: #{_lambda_.1} parent=11 // pred_region
        _
      $region20: #{_lambda_.1} parent=11 // pred_fallthru
        _
    $region12: #{_lambda_.1} parent=5 // pred_fallthru
      _
    %p124 = scmp.lt.s32.totalorder %s9, 8
    // Predicated region
    $region21: #{_lambda_.1} parent=5 // pred_check
      %p125 = pneg %p124
    $region22: #{_lambda_.1} parent=5 // pred_check_branch
      %127 = sbr.rel (%p125) target = $region24
    $region23: #{_lambda_.1} parent=5 // pred_region
      // Predicated region
      $region25: #{_lambda_.1} parent=23 // pred_check
        %p128 = pneg %p29
      $region26: #{_lambda_.1} parent=23 // pred_check_branch
        %130 = sbr.rel (%p128) target = $region28
      $region27: #{_lambda_.1} parent=23 // pred_region
        %s131 = smul.u32 4, %s9
        %p132 = scmp.lt.s32.totalorder %s131, 31
        %s133 = scalar_select %p132, %s131, 31
        %s134 = smul.addr %s133, 8
        %s135 = scalar_lea.vmem %s0, %s134
        %s136 = smul.u32 4, %s9
      $region28: #{_lambda_.1} parent=23 // pred_fallthru
        _
    $region24: #{_lambda_.1} parent=5 // pred_fallthru
      _
    %p137 = scmp.le.s32.totalorder 1, %s9
    %p138 = scmp.lt.s32.totalorder %s9, 9
    %p139 = pnand %p137, %p138
    %p140 = pneg %p139
    // Predicated region
    $region29: #{_lambda_.1} parent=5 // pred_check
      _
    $region30: #{_lambda_.1} parent=5 // pred_check_branch
      %142 = sbr.rel (%p139) target = $region32
    $region31: #{_lambda_.1} parent=5 // pred_region
      %s143 = ssub.s32 %s9, 1
      %s144 = smul.u32 4, %s14
      %p145 = scmp.lt.s32.totalorder %s144, 31
      %s146 = scalar_select %p145, %s144, 31
      %s147 = smul.addr %s146, 8
      %s148 = scalar_lea.vmem %s0, %s147
      %p149 = pneg %p35
      %p150 = pneg %p32
      %p151 = pneg %p56
      %p152 = pneg %p53
      %p153 = pneg %p77
      %p154 = pneg %p74
      %p155 = pneg %p103
      %p156 = pneg %p100
      %s157 = smul.u32 4, %s14
      %p158 = scmp.lt.s32.totalorder %s157, 31
      %s159 = scalar_select %p158, %s157, 31
      %s160 = smul.addr %s159, 8
      %s161 = scalar_lea.vmem %s3, %s160
      %s162 = smul.u32 4, %s14
      %p163 = scmp.lt.s32.totalorder %s162, 31
      %s164 = scalar_select %p163, %s162, 31
      %s165 = smul.addr %s164, 8
      %s166 = scalar_lea.vmem %s0, %s165
      %s167 = smul.u32 4, %s14
      %s168 = smul.u32 4, %s14
      %p169 = scmp.lt.s32.totalorder %s168, 31
      %s170 = scalar_select %p169, %s168, 31
      %s171 = smul.addr %s170, 8
      %s172 = scalar_lea.vmem %s3, %s171
      %s173 = smul.u32 4, %s14
      %v174 = vld [vmem:[%s166] sm:$0xff]
      %v175 = vld [vmem:[%s166 + $0x8] sm:$0xff]
      %v176 = vld [vmem:[%s166 + $0x10] sm:$0xff]
      %v177 = vld [vmem:[%s166 + $0x18] sm:$0xff]
      %v178 = vmul.f32 %v174, %v174
      %v179 = vmul.f32 %v175, %v175
      %v180 = vmul.f32 %v176, %v176
      %v181 = vmul.f32 %v177, %v177
      %v182 = vld [vmem:[%s2] sm:$0xff]
      %v183 = vld [vmem:[%s2 + $0x8] sm:$0xff]
      %v184 = vld [vmem:[%s2 + $0x10] sm:$0xff]
      %v185 = vld [vmem:[%s2 + $0x18] sm:$0xff]
      %v186 = vld [vmem:[%s2 + $0x20] sm:$0xff]
      %v187 = vld [vmem:[%s2 + $0x28] sm:$0xff]
      %v188 = vld [vmem:[%s2 + $0x30] sm:$0xff]
      %v189 = vld [vmem:[%s2 + $0x38] sm:$0xff]
      %v190 = vld [vmem:[%s2 + $0x40] sm:$0xff]
      %v191 = vld [vmem:[%s2 + $0x48] sm:$0xff]
      %v192 = vld [vmem:[%s2 + $0x50] sm:$0xff]
      %v193 = vld [vmem:[%s2 + $0x58] sm:$0xff]
      %v194 = vld [vmem:[%s2 + $0x60] sm:$0xff]
      %v195 = vld [vmem:[%s2 + $0x68] sm:$0xff]
      %v196 = vld [vmem:[%s2 + $0x70] sm:$0xff]
      %v197 = vld [vmem:[%s2 + $0x78] sm:$0xff]
      %198 = vmatprep.subr.mxu0 0.0
      %199 = vmatpush1.msra.mxu0 %v182
      %200 = vmatprep.subr.mxu0 0.0
      %201 = vmatpush1.msra.mxu0 %v183
      %202 = vmatprep.subr.mxu0 0.0
      %203 = vmatpush1.msra.mxu0 %v184
      %204 = vmatprep.subr.mxu0 0.0
      %205 = vmatpush1.msra.mxu0 %v185
      %206 = vmatprep.subr.mxu0 0.0
      %207 = vmatpush1.msra.mxu0 %v186
      %208 = vmatprep.subr.mxu0 0.0
      %209 = vmatpush1.msra.mxu0 %v187
      %210 = vmatprep.subr.mxu0 0.0
      %211 = vmatpush1.msra.mxu0 %v188
      %212 = vmatprep.subr.mxu0 0.0
      %213 = vmatpush1.msra.mxu0 %v189
      %214 = vmatprep.subr.mxu0 0.0
      %215 = vmatpush1.msra.mxu0 %v190
      %216 = vmatprep.subr.mxu0 0.0
      %217 = vmatpush1.msra.mxu0 %v191
      %218 = vmatprep.subr.mxu0 0.0
      %219 = vmatpush1.msra.mxu0 %v192
      %220 = vmatprep.subr.mxu0 0.0
      %221 = vmatpush1.msra.mxu0 %v193
      %222 = vmatprep.subr.mxu0 0.0
      %223 = vmatpush1.msra.mxu0 %v194
      %224 = vmatprep.subr.mxu0 0.0
      %225 = vmatpush1.msra.mxu0 %v195
      %226 = vmatprep.subr.mxu0 0.0
      %227 = vmatpush1.msra.mxu0 %v196
      %228 = vmatprep.subr.mxu0 0.0
      %229 = vmatpush1.msra.mxu0 %v197
      %230 = vmatprep.subr.mxu0 0.0
      %231 = vmatpush1.msra.mxu0 0.0
      %232 = vmatprep.subr.mxu0 0.0
      %233 = vmatpush1.msra.mxu0 0.0
      %234 = vmatprep.subr.mxu0 0.0
      %235 = vmatpush1.msra.mxu0 0.0
      %236 = vmatprep.subr.mxu0 0.0
      %237 = vmatpush1.msra.mxu0 0.0
      %238 = vmatprep.subr.mxu0 0.0
      %239 = vmatpush1.msra.mxu0 0.0
      %240 = vmatprep.subr.mxu0 0.0
      %241 = vmatpush1.msra.mxu0 0.0
      %242 = vmatprep.subr.mxu0 0.0
      %243 = vmatpush1.msra.mxu0 0.0
      %244 = vmatprep.subr.mxu0 0.0
      %245 = vmatpush1.msra.mxu0 0.0
      %246 = vmatprep.subr.mxu0 0.0
      %247 = vmatpush1.msra.mxu0 0.0
      %248 = vmatprep.subr.mxu0 0.0
      %249 = vmatpush1.msra.mxu0 0.0
      %250 = vmatprep.subr.mxu0 0.0
      %251 = vmatpush1.msra.mxu0 0.0
      %252 = vmatprep.subr.mxu0 0.0
      %253 = vmatpush1.msra.mxu0 0.0
      %254 = vmatprep.subr.mxu0 0.0
      %255 = vmatpush1.msra.mxu0 0.0
      %256 = vmatprep.subr.mxu0 0.0
      %257 = vmatpush1.msra.mxu0 0.0
      %258 = vmatprep.subr.mxu0 0.0
      %259 = vmatpush1.msra.mxu0 0.0
      %260 = vmatprep.subr.mxu0 0.0
      %261 = vmatpush1.msra.mxu0 0.0
      %262 = vmatprep.mubr.f32.mxu0 0.0
      %263 = vmatmul.mubr.f32.gmra.mrb[0].mxu0 %v178
      %v264 = vpop.f32.mrb[0].mxu0
      %v265 = vadd.f32 0.0, %v264
      %v266 = vpop.f32.mrb[0].mxu0
      %267 = vmatprep.mubr.f32.mxu0 0.0
      %268 = vmatmul.mubr.f32.gmra.mrb[0].mxu0 %v179
      %v269 = vpop.f32.mrb[0].mxu0
      %v270 = vadd.f32 0.0, %v269
      %v271 = vpop.f32.mrb[0].mxu0
      %272 = vmatprep.mubr.f32.mxu0 0.0
      %273 = vmatmul.mubr.f32.gmra.mrb[0].mxu0 %v180
      %v274 = vpop.f32.mrb[0].mxu0
      %v275 = vadd.f32 0.0, %v274
      %v276 = vpop.f32.mrb[0].mxu0
      %277 = vmatprep.mubr.f32.mxu0 0.0
      %278 = vmatmul.mubr.f32.gmra.mrb[0].mxu0 %v181
      %v279 = vpop.f32.mrb[0].mxu0
      %v280 = vadd.f32 0.0, %v279
      %v281 = vpop.f32.mrb[0].mxu0
      %282 = vdwg.mxu0
      %v283 = vld [vmem:[%s1] sm:$0xff]
      %v284 = vld [vmem:[%s1 + $0x8] sm:$0xff]
      %v285 = vld [vmem:[%s1 + $0x10] sm:$0xff]
      %v286 = vld [vmem:[%s1 + $0x18] sm:$0xff]
      %v287 = vld [vmem:[%s1 + $0x20] sm:$0xff]
      %v288 = vld [vmem:[%s1 + $0x28] sm:$0xff]
      %v289 = vld [vmem:[%s1 + $0x30] sm:$0xff]
      %v290 = vld [vmem:[%s1 + $0x38] sm:$0xff]
      %v291 = vld [vmem:[%s1 + $0x40] sm:$0xff]
      %v292 = vld [vmem:[%s1 + $0x48] sm:$0xff]
      %v293 = vld [vmem:[%s1 + $0x50] sm:$0xff]
      %v294 = vld [vmem:[%s1 + $0x58] sm:$0xff]
      %v295 = vld [vmem:[%s1 + $0x60] sm:$0xff]
      %v296 = vld [vmem:[%s1 + $0x68] sm:$0xff]
      %v297 = vld [vmem:[%s1 + $0x70] sm:$0xff]
      %v298 = vld [vmem:[%s1 + $0x78] sm:$0xff]
      %v299 = vld [vmem:[%s1 + $0x80] sm:$0xff]
      %v300 = vld [vmem:[%s1 + $0x88] sm:$0xff]
      %v301 = vld [vmem:[%s1 + $0x90] sm:$0xff]
      %v302 = vld [vmem:[%s1 + $0x98] sm:$0xff]
      %v303 = vld [vmem:[%s1 + $0xa0] sm:$0xff]
      %v304 = vld [vmem:[%s1 + $0xa8] sm:$0xff]
      %v305 = vld [vmem:[%s1 + $0xb0] sm:$0xff]
      %v306 = vld [vmem:[%s1 + $0xb8] sm:$0xff]
      %v307 = vld [vmem:[%s1 + $0xc0] sm:$0xff]
      %v308 = vld [vmem:[%s1 + $0xc8] sm:$0xff]
      %v309 = vld [vmem:[%s1 + $0xd0] sm:$0xff]
      %v310 = vld [vmem:[%s1 + $0xd8] sm:$0xff]
      %v311 = vld [vmem:[%s1 + $0xe0] sm:$0xff]
      %v312 = vld [vmem:[%s1 + $0xe8] sm:$0xff]
      %v313 = vld [vmem:[%s1 + $0xf0] sm:$0xff]
      %v314 = vld [vmem:[%s1 + $0xf8] sm:$0xff]
      %v315 = vld [vmem:[%s1 + $0x100] sm:$0xff]
      %v316 = vld [vmem:[%s1 + $0x108] sm:$0xff]
      %v317 = vld [vmem:[%s1 + $0x110] sm:$0xff]
      %v318 = vld [vmem:[%s1 + $0x118] sm:$0xff]
      %v319 = vld [vmem:[%s1 + $0x120] sm:$0xff]
      %v320 = vld [vmem:[%s1 + $0x128] sm:$0xff]
      %v321 = vld [vmem:[%s1 + $0x130] sm:$0xff]
      %v322 = vld [vmem:[%s1 + $0x138] sm:$0xff]
      %v323 = vld [vmem:[%s1 + $0x140] sm:$0xff]
      %v324 = vld [vmem:[%s1 + $0x148] sm:$0xff]
      %v325 = vld [vmem:[%s1 + $0x150] sm:$0xff]
      %v326 = vld [vmem:[%s1 + $0x158] sm:$0xff]
      %v327 = vld [vmem:[%s1 + $0x160] sm:$0xff]
      %v328 = vld [vmem:[%s1 + $0x168] sm:$0xff]
      %v329 = vld [vmem:[%s1 + $0x170] sm:$0xff]
      %v330 = vld [vmem:[%s1 + $0x178] sm:$0xff]
      %v331 = vld [vmem:[%s1 + $0x180] sm:$0xff]
      %v332 = vld [vmem:[%s1 + $0x188] sm:$0xff]
      %v333 = vld [vmem:[%s1 + $0x190] sm:$0xff]
      %v334 = vld [vmem:[%s1 + $0x198] sm:$0xff]
      %v335 = vld [vmem:[%s1 + $0x1a0] sm:$0xff]
      %v336 = vld [vmem:[%s1 + $0x1a8] sm:$0xff]
      %v337 = vld [vmem:[%s1 + $0x1b0] sm:$0xff]
      %v338 = vld [vmem:[%s1 + $0x1b8] sm:$0xff]
      %v339 = vld [vmem:[%s1 + $0x1c0] sm:$0xff]
      %v340 = vld [vmem:[%s1 + $0x1c8] sm:$0xff]
      %v341 = vld [vmem:[%s1 + $0x1d0] sm:$0xff]
      %v342 = vld [vmem:[%s1 + $0x1d8] sm:$0xff]
      %v343 = vld [vmem:[%s1 + $0x1e0] sm:$0xff]
      %v344 = vld [vmem:[%s1 + $0x1e8] sm:$0xff]
      %v345 = vld [vmem:[%s1 + $0x1f0] sm:$0xff]
      %v346 = vld [vmem:[%s1 + $0x1f8] sm:$0xff]
      %347 = vmatprep.subr.mxu0 %v284
      %348 = vmatpush1.msra.mxu0 %v283
      %349 = vmatprep.subr.mxu0 %v288
      %350 = vmatpush1.msra.mxu0 %v287
      %351 = vmatprep.subr.mxu0 %v292
      %352 = vmatpush1.msra.mxu0 %v291
      %353 = vmatprep.subr.mxu0 %v296
      %354 = vmatpush1.msra.mxu0 %v295
      %355 = vmatprep.subr.mxu0 %v300
      %356 = vmatpush1.msra.mxu0 %v299
      %357 = vmatprep.subr.mxu0 %v304
      %358 = vmatpush1.msra.mxu0 %v303
      %359 = vmatprep.subr.mxu0 %v308
      %360 = vmatpush1.msra.mxu0 %v307
      %361 = vmatprep.subr.mxu0 %v312
      %362 = vmatpush1.msra.mxu0 %v311
      %363 = vmatprep.subr.mxu0 %v316
      %364 = vmatpush1.msra.mxu0 %v315
      %365 = vmatprep.subr.mxu0 %v320
      %366 = vmatpush1.msra.mxu0 %v319
      %367 = vmatprep.subr.mxu0 %v324
      %368 = vmatpush1.msra.mxu0 %v323
      %369 = vmatprep.subr.mxu0 %v328
      %370 = vmatpush1.msra.mxu0 %v327
      %371 = vmatprep.subr.mxu0 %v332
      %372 = vmatpush1.msra.mxu0 %v331
      %373 = vmatprep.subr.mxu0 %v336
      %374 = vmatpush1.msra.mxu0 %v335
      %375 = vmatprep.subr.mxu0 %v340
      %376 = vmatpush1.msra.mxu0 %v339
      %377 = vmatprep.subr.mxu0 %v344
      %378 = vmatpush1.msra.mxu0 %v343
      %379 = vmatprep.subr.mxu0 0.0
      %380 = vmatpush1.msra.mxu0 0.0
      %381 = vmatprep.subr.mxu0 0.0
      %382 = vmatpush1.msra.mxu0 0.0
      %383 = vmatprep.subr.mxu0 0.0
      %384 = vmatpush1.msra.mxu0 0.0
      %385 = vmatprep.subr.mxu0 0.0
      %386 = vmatpush1.msra.mxu0 0.0
      %387 = vmatprep.subr.mxu0 0.0
      %388 = vmatpush1.msra.mxu0 0.0
      %389 = vmatprep.subr.mxu0 0.0
      %390 = vmatpush1.msra.mxu0 0.0
      %391 = vmatprep.subr.mxu0 0.0
      %392 = vmatpush1.msra.mxu0 0.0
      %393 = vmatprep.subr.mxu0 0.0
      %394 = vmatpush1.msra.mxu0 0.0
      %395 = vmatprep.subr.mxu0 0.0
      %396 = vmatpush1.msra.mxu0 0.0
      %397 = vmatprep.subr.mxu0 0.0
      %398 = vmatpush1.msra.mxu0 0.0
      %399 = vmatprep.subr.mxu0 0.0
      %400 = vmatpush1.msra.mxu0 0.0
      %401 = vmatprep.subr.mxu0 0.0
      %402 = vmatpush1.msra.mxu0 0.0
      %403 = vmatprep.subr.mxu0 0.0
      %404 = vmatpush1.msra.mxu0 0.0
      %405 = vmatprep.subr.mxu0 0.0
      %406 = vmatpush1.msra.mxu0 0.0
      %407 = vmatprep.subr.mxu0 0.0
      %408 = vmatpush1.msra.mxu0 0.0
      %409 = vmatprep.subr.mxu0 0.0
      %410 = vmatpush1.msra.mxu0 0.0
      %411 = vmatprep.mubr.f32.mxu0 0.0
      %412 = vmatmul.mubr.f32.gmra.mrb[0].mxu0 %v174
      %v413 = vpop.f32.mrb[0].mxu0
      %v414 = vadd.f32 0.0, %v413
      %v415 = vpop.f32.mrb[0].mxu0
      %v416 = vadd.f32 0.0, %v415
      %417 = vmatprep.mubr.f32.mxu0 0.0
      %418 = vmatmul.mubr.f32.gmra.mrb[0].mxu0 %v175
      %v419 = vpop.f32.mrb[0].mxu0
      %v420 = vadd.f32 0.0, %v419
      %v421 = vpop.f32.mrb[0].mxu0
      %v422 = vadd.f32 0.0, %v421
      %423 = vmatprep.mubr.f32.mxu0 0.0
      %424 = vmatmul.mubr.f32.gmra.mrb[0].mxu0 %v176
      %v425 = vpop.f32.mrb[0].mxu0
      %v426 = vadd.f32 0.0, %v425
      %v427 = vpop.f32.mrb[0].mxu0
      %v428 = vadd.f32 0.0, %v427
      %429 = vmatprep.mubr.f32.mxu0 0.0
      %430 = vmatmul.mubr.f32.gmra.mrb[0].mxu0 %v177
      %v431 = vpop.f32.mrb[0].mxu0
      %v432 = vadd.f32 0.0, %v431
      %v433 = vpop.f32.mrb[0].mxu0
      %v434 = vadd.f32 0.0, %v433
      %435 = vdwg.mxu0
      %436 = vmatprep.subr.mxu0 %v286
      %437 = vmatpush1.msra.mxu0 %v285
      %438 = vmatprep.subr.mxu0 %v290
      %439 = vmatpush1.msra.mxu0 %v289
      %440 = vmatprep.subr.mxu0 %v294
      %441 = vmatpush1.msra.mxu0 %v293
      %442 = vmatprep.subr.mxu0 %v298
      %443 = vmatpush1.msra.mxu0 %v297
      %444 = vmatprep.subr.mxu0 %v302
      %445 = vmatpush1.msra.mxu0 %v301
      %446 = vmatprep.subr.mxu0 %v306
      %447 = vmatpush1.msra.mxu0 %v305
      %448 = vmatprep.subr.mxu0 %v310
      %449 = vmatpush1.msra.mxu0 %v309
      %450 = vmatprep.subr.mxu0 %v314
      %451 = vmatpush1.msra.mxu0 %v313
      %452 = vmatprep.subr.mxu0 %v318
      %453 = vmatpush1.msra.mxu0 %v317
      %454 = vmatprep.subr.mxu0 %v322
      %455 = vmatpush1.msra.mxu0 %v321
      %456 = vmatprep.subr.mxu0 %v326
      %457 = vmatpush1.msra.mxu0 %v325
      %458 = vmatprep.subr.mxu0 %v330
      %459 = vmatpush1.msra.mxu0 %v329
      %460 = vmatprep.subr.mxu0 %v334
      %461 = vmatpush1.msra.mxu0 %v333
      %462 = vmatprep.subr.mxu0 %v338
      %463 = vmatpush1.msra.mxu0 %v337
      %464 = vmatprep.subr.mxu0 %v342
      %465 = vmatpush1.msra.mxu0 %v341
      %466 = vmatprep.subr.mxu0 %v346
      %467 = vmatpush1.msra.mxu0 %v345
      %468 = vmatprep.subr.mxu0 0.0
      %469 = vmatpush1.msra.mxu0 0.0
      %470 = vmatprep.subr.mxu0 0.0
      %471 = vmatpush1.msra.mxu0 0.0
      %472 = vmatprep.subr.mxu0 0.0
      %473 = vmatpush1.msra.mxu0 0.0
      %474 = vmatprep.subr.mxu0 0.0
      %475 = vmatpush1.msra.mxu0 0.0
      %476 = vmatprep.subr.mxu0 0.0
      %477 = vmatpush1.msra.mxu0 0.0
      %478 = vmatprep.subr.mxu0 0.0
      %479 = vmatpush1.msra.mxu0 0.0
      %480 = vmatprep.subr.mxu0 0.0
      %481 = vmatpush1.msra.mxu0 0.0
      %482 = vmatprep.subr.mxu0 0.0
      %483 = vmatpush1.msra.mxu0 0.0
      %484 = vmatprep.subr.mxu0 0.0
      %485 = vmatpush1.msra.mxu0 0.0
      %486 = vmatprep.subr.mxu0 0.0
      %487 = vmatpush1.msra.mxu0 0.0
      %488 = vmatprep.subr.mxu0 0.0
      %489 = vmatpush1.msra.mxu0 0.0
      %490 = vmatprep.subr.mxu0 0.0
      %491 = vmatpush1.msra.mxu0 0.0
      %492 = vmatprep.subr.mxu0 0.0
      %493 = vmatpush1.msra.mxu0 0.0
      %494 = vmatprep.subr.mxu0 0.0
      %495 = vmatpush1.msra.mxu0 0.0
      %496 = vmatprep.subr.mxu0 0.0
      %497 = vmatpush1.msra.mxu0 0.0
      %498 = vmatprep.subr.mxu0 0.0
      %499 = vmatpush1.msra.mxu0 0.0
      %500 = vmatprep.mubr.f32.mxu0 0.0
      %501 = vmatmul.mubr.f32.gmra.mrb[0].mxu0 %v174
      %v502 = vpop.f32.mrb[0].mxu0
      %v503 = vadd.f32 0.0, %v502
      %v504 = vpop.f32.mrb[0].mxu0
      %v505 = vadd.f32 0.0, %v504
      %506 = vmatprep.mubr.f32.mxu0 0.0
      %507 = vmatmul.mubr.f32.gmra.mrb[0].mxu0 %v175
      %v508 = vpop.f32.mrb[0].mxu0
      %v509 = vadd.f32 0.0, %v508
      %v510 = vpop.f32.mrb[0].mxu0
      %v511 = vadd.f32 0.0, %v510
      %512 = vmatprep.mubr.f32.mxu0 0.0
      %513 = vmatmul.mubr.f32.gmra.mrb[0].mxu0 %v176
      %v514 = vpop.f32.mrb[0].mxu0
      %v515 = vadd.f32 0.0, %v514
      %v516 = vpop.f32.mrb[0].mxu0
      %v517 = vadd.f32 0.0, %v516
      %518 = vmatprep.mubr.f32.mxu0 0.0
      %519 = vmatmul.mubr.f32.gmra.mrb[0].mxu0 %v177
      %v520 = vpop.f32.mrb[0].mxu0
      %v521 = vadd.f32 0.0, %v520
      %v522 = vpop.f32.mrb[0].mxu0
      %v523 = vadd.f32 0.0, %v522
      %524 = vdwg.mxu0
      %v525 = vmul.f32 %v414, %v414
      %v526 = vmul.f32 %v416, %v416
      %v527 = vmul.f32 %v503, %v503
      %v528 = vmul.f32 %v505, %v505
      %v529 = vmul.f32 %v420, %v420
      %v530 = vmul.f32 %v422, %v422
      %v531 = vmul.f32 %v509, %v509
      %v532 = vmul.f32 %v511, %v511
      %v533 = vmul.f32 %v426, %v426
      %v534 = vmul.f32 %v428, %v428
      %v535 = vmul.f32 %v515, %v515
      %v536 = vmul.f32 %v517, %v517
      %v537 = vmul.f32 %v432, %v432
      %v538 = vmul.f32 %v434, %v434
      %v539 = vmul.f32 %v521, %v521
      %v540 = vmul.f32 %v523, %v523
      %v541 = vadd.f32 %v525, %v527
      %v542 = vadd.f32 %v526, %v528
      %v543 = vadd.f32 %v529, %v531
      %v544 = vadd.f32 %v530, %v532
      %v545 = vadd.f32 %v533, %v535
      %v546 = vadd.f32 %v534, %v536
      %v547 = vadd.f32 %v537, %v539
      %v548 = vadd.f32 %v538, %v540
      %v549 = vadd.f32 %v541, %v542
      %v550 = vadd.f32 %v543, %v544
      %v551 = vadd.f32 %v545, %v546
      %v552 = vadd.f32 %v547, %v548
      %v553 = vmax.f32 %v265, 1e-30
      %v554 = vmax.f32 %v270, 1e-30
      %v555 = vmax.f32 %v275, 1e-30
      %v556 = vmax.f32 %v280, 1e-30
      %v557 = vrcp.pop %v553
      %v558 = vmul.f32 %v549, %v557
      %v559 = vrcp.pop %v554
      %v560 = vmul.f32 %v550, %v559
      %v561 = vrcp.pop %v555
      %v562 = vmul.f32 %v551, %v561
      %v563 = vrcp.pop %v556
      %v564 = vmul.f32 %v552, %v563
      %565 = vst [vmem:[%s172] sm:$0xff] %v558
      %566 = vst [vmem:[%s172 + $0x8] sm:$0xff] %v560
      %567 = vst [vmem:[%s172 + $0x10] sm:$0xff] %v562
      %568 = vst [vmem:[%s172 + $0x18] sm:$0xff] %v564
      %s569 = smul.u32 4, %s14
      %p570 = scmp.lt.s32.totalorder %s569, 31
      %s571 = scalar_select %p570, %s569, 31
      %s572 = smul.addr %s571, 8
      %s573 = scalar_lea.vmem %s3, %s572
      // Predicated region
      $region33: #{_lambda_.1} parent=31 // pred_check
        %p574 = pneg %p100
      $region34: #{_lambda_.1} parent=31 // pred_check_branch
        %576 = sbr.rel (%p574) target = $region36
      $region35: #{_lambda_.1} parent=31 // pred_region
        %s577 = smul.u32 4, %s14
      $region36: #{_lambda_.1} parent=31 // pred_fallthru
        _
    $region32: #{_lambda_.1} parent=5 // pred_fallthru
      _
    %p578 = scmp.le.s32.totalorder 2, %s9
    // Predicated region
    $region37: #{_lambda_.1} parent=5 // pred_check
      %p579 = pneg %p578
    $region38: #{_lambda_.1} parent=5 // pred_check_branch
      %581 = sbr.rel (%p579) target = $region40
    $region39: #{_lambda_.1} parent=5 // pred_region
      %s582 = ssub.s32 %s9, 2
      // Predicated region
      $region41: #{_lambda_.1} parent=39 // pred_check
        %p583 = pneg %p106
      $region42: #{_lambda_.1} parent=39 // pred_check_branch
        %585 = sbr.rel (%p583) target = $region44
      $region43: #{_lambda_.1} parent=39 // pred_region
        %s586 = smul.u32 4, %s15
        %p587 = scmp.lt.s32.totalorder %s586, 31
        %s588 = scalar_select %p587, %s586, 31
        %s589 = smul.addr %s588, 8
        %s590 = scalar_lea.vmem %s3, %s589
      $region44: #{_lambda_.1} parent=39 // pred_fallthru
        _
    $region40: #{_lambda_.1} parent=5 // pred_fallthru
      _
  $region6: #{_lambda_.1} parent=0 // loop_footer
    %s13 = sadd.s32 1, %s9
  $region7: #{_lambda_.1} parent=0 // loop_footer_branch
    %8 = sbr.rel target = $region3
  $region8: #{_lambda_.1} parent=0 // loop_exit
    _

</llo_original>
